<compile_context>
chip_gen: v5e
topology: v5e:2x2
jax: 0.10.0
libtpu: 0.0.40
codegen_flags: <defaults>
</compile_context>

<pallas_src>
import functools

import jax
import jax.numpy as jnp
from jax.experimental import pallas as pl
from jax.experimental.pallas import tpu as pltpu


# --------------------------------------------------------------------------
# Kernels
# --------------------------------------------------------------------------

def _se_kernel_single(x_ref, w1t_ref, w2t_ref, o_ref, *, hw_total):
    """Full-extent spatial block: one reduction step per batch tile, no scratch."""
    x = x_ref[...]                                            # (tb, c, hw)
    n_cols = hw_total // 128
    if hw_total % 128 == 0 and 2 <= n_cols <= 64:
        # Column-wise VPU adds first, then a single 128-lane XLU reduce.
        acc = x[:, :, :128].astype(jnp.float32)
        for j in range(1, n_cols):
            acc = acc + x[:, :, j * 128:(j + 1) * 128].astype(jnp.float32)
        y = jnp.sum(acc, axis=-1)
    else:
        y = jnp.sum(x, axis=-1, dtype=jnp.float32)
    y = y * jnp.float32(1.0 / hw_total)                       # (tb, c) mean
    h = jnp.maximum(
        jnp.dot(y, w1t_ref[...], preferred_element_type=jnp.float32), 0.0)
    z = jnp.dot(h, w2t_ref[...], preferred_element_type=jnp.float32)
    o_ref[...] = jax.nn.sigmoid(z).astype(o_ref.dtype)


def _se_kernel_tiled(x_ref, w1t_ref, w2t_ref, o_ref, acc_ref, *,
                     hw_total, thw, ragged):
    """Tiled spatial reduction.  x_ref: (tb, c, thw) with thw % 128 == 0.
    acc_ref: (tb, c, 128) f32 lane-shaped partial sums (VPU adds per step)."""
    hw_idx = pl.program_id(1)
    n_hw = pl.num_programs(1)
    n_cols = thw // 128
    last_start = (pl.cdiv(hw_total, thw) - 1) * thw           # static

    @pl.when(hw_idx == 0)
    def _init():
        acc_ref[...] = jnp.zeros_like(acc_ref)

    x = x_ref[...]

    def accumulate(tail):
        acc = acc_ref[...]
        for j in range(n_cols):
            col_start = j * 128
            if tail:
                g = last_start + col_start                    # static global offset
                if g >= hw_total:
                    continue                                  # fully padded column
                col = x[:, :, col_start:col_start + 128].astype(jnp.float32)
                if g + 128 > hw_total:                        # partially padded column
                    lane = jax.lax.broadcasted_iota(jnp.int32, col.shape, 2)
                    col = jnp.where(g + lane < hw_total, col, jnp.zeros_like(col))
                acc = acc + col
            else:
                acc = acc + x[:, :, col_start:col_start + 128].astype(jnp.float32)
        acc_ref[...] = acc

    if ragged:
        # Mask only on the last (partial) spatial tile; full tiles stay mask-free.
        @pl.when(hw_idx != n_hw - 1)
        def _full_tiles():
            accumulate(tail=False)

        @pl.when(hw_idx == n_hw - 1)
        def _tail_tile():
            accumulate(tail=True)
    else:
        accumulate(tail=False)

    @pl.when(hw_idx == n_hw - 1)
    def _finalize():
        # Single cross-lane reduce + mean scale, then the tiny excitation MLP.
        y = jnp.sum(acc_ref[...], axis=-1) * jnp.float32(1.0 / hw_total)   # (tb, c)
        h = jnp.maximum(
            jnp.dot(y, w1t_ref[...], preferred_element_type=jnp.float32), 0.0)
        z = jnp.dot(h, w2t_ref[...], preferred_element_type=jnp.float32)
        o_ref[...] = jax.nn.sigmoid(z).astype(o_ref.dtype)


# --------------------------------------------------------------------------
# Sizing helpers
# --------------------------------------------------------------------------

def _vmem_budget():
    """(per-input-buffer budget, vmem_limit_bytes), generation-aware but safe."""
    budget = 8 << 20            # conservative: v7x has 64 MiB VMEM / 32 MiB scoped
    vmem_limit = 32 << 20
    try:
        info = pltpu.get_tpu_info()
        if getattr(info, "vmem_capacity_bytes", 0) >= (128 << 20):
            budget = 16 << 20   # v5e / v6e: 128 MiB physical VMEM
            vmem_limit = 64 << 20
    except Exception:
        pass
    return budget, vmem_limit


def _pick_tiles(b, c, hw, itemsize, budget):
    """Pick (tb, thw).  thw = full spatial extent when it fits (exempt from the
    128-lane rule), otherwise a multiple of 128.  tb is the full batch or a
    multiple of 8 so output blocks stay sublane-aligned."""
    row_bytes = c * itemsize
    if hw * row_bytes <= budget:
        thw = hw
    else:
        thw = 1024
        while thw > 128 and thw * row_bytes > budget:
            thw //= 2
    cap = max(1, budget // max(1, thw * row_bytes))
    if thw != hw:
        # keep the (tb, c, 128) f32 lane accumulator scratch modest too
        cap = min(cap, max(1, (4 << 20) // (c * 128 * 4)))
    if b >= 16:
        # >= 2 batch tiles so both v7x TensorCores stream the HBM-bound squeeze
        cap = min(cap, pl.cdiv(b, 2))
    if cap >= b:
        tb = b
    elif cap >= 8:
        tb = (cap // 8) * 8
    else:
        tb = min(b, 8)          # keep alignment; tiny budget overshoot is fine
    return int(tb), int(thw)


# --------------------------------------------------------------------------
# Wrapper
# --------------------------------------------------------------------------

def se_layer(x, w1, w2, *, _per_buffer_budget=None):
    """x: (b, c, h, w) NCHW.  w1: (c_red, c) torch Linear weight.  w2: (c, c_red).
    Returns the SE gate of shape (b, c, 1, 1), matching SELayer.forward."""
    b, c, h, w = x.shape
    c_red = w1.shape[0]
    assert w1.shape == (c_red, c) and w2.shape == (c, c_red)

    hw = h * w
    x_flat = x.reshape(b, c, hw)                      # glue reshape in plain JAX
    # Pre-cast the tiny weights once; kernel does no per-finalize upcasts.
    w1t = jnp.transpose(w1).astype(jnp.float32)       # (c, c_red)
    w2t = jnp.transpose(w2).astype(jnp.float32)       # (c_red, c)

    itemsize = jnp.dtype(x.dtype).itemsize
    budget, vmem_limit = _vmem_budget()
    if _per_buffer_budget is not None:                # test hook: force tiling
        budget = _per_buffer_budget
    tb, thw = _pick_tiles(b, c, hw, itemsize, budget)

    cost = pl.CostEstimate(
        flops=b * c * hw + 4 * b * c * c_red,
        transcendentals=b * c,
        bytes_accessed=(b * c * hw * itemsize + 2 * c * c_red * 4 + b * c * itemsize),
    )

    if thw == hw:
        # Single spatial step per batch tile: simplest, mask-free kernel.
        grid = (pl.cdiv(b, tb),)
        kernel = functools.partial(_se_kernel_single, hw_total=hw)
        in_specs = [
            pl.BlockSpec((tb, c, hw), lambda bi: (bi, 0, 0)),
            pl.BlockSpec((c, c_red), lambda bi: (0, 0)),
            pl.BlockSpec((c_red, c), lambda bi: (0, 0)),
        ]
        out_specs = pl.BlockSpec((tb, c), lambda bi: (bi, 0))
        scratch_shapes = []
        dim_sem = ("parallel",)
    else:
        # Spatial reduction axis last, marked "arbitrary"; batch axis "parallel".
        grid = (pl.cdiv(b, tb), pl.cdiv(hw, thw))
        ragged = (hw % thw) != 0
        kernel = functools.partial(_se_kernel_tiled, hw_total=hw, thw=thw,
                                   ragged=ragged)
        in_specs = [
            # x streamed over (batch, spatial); auto double-buffered.
            # (pipeline_mode=pl.Buffered(3) only if an xprof trace shows DMA gaps.)
            pl.BlockSpec((tb, c, thw), lambda bi, hi: (bi, 0, hi)),
            # Weights resident across the whole grid (constant block index).
            pl.BlockSpec((c, c_red), lambda bi, hi: (0, 0)),
            pl.BlockSpec((c_red, c), lambda bi, hi: (0, 0)),
        ]
        # Output block constant across the spatial axis -> written once at finalize.
        out_specs = pl.BlockSpec((tb, c), lambda bi, hi: (bi, 0))
        scratch_shapes = [pltpu.VMEM((tb, c, 128), jnp.float32)]
        dim_sem = ("parallel", "arbitrary")

    out = pl.pallas_call(
        kernel,
        out_shape=jax.ShapeDtypeStruct((b, c), x.dtype),
        grid_spec=pltpu.PrefetchScalarGridSpec(
            num_scalar_prefetch=0,
            grid=grid,
            in_specs=in_specs,
            out_specs=out_specs,
            scratch_shapes=scratch_shapes,
        ),
        compiler_params=pltpu.CompilerParams(
            dimension_semantics=dim_sem,
            vmem_limit_bytes=vmem_limit,
        ),
        cost_estimate=cost,
    )(x_flat, w1t, w2t)

    return out.reshape(b, c, 1, 1)


# --------------------------------------------------------------------------
# Reference + tests
# --------------------------------------------------------------------------

def _reference(x, w1, w2):
    y = jnp.mean(x.astype(jnp.float32), axis=(2, 3))
    h = jnp.maximum(y @ w1.T.astype(jnp.float32), 0.0)
    z = jax.nn.sigmoid(h @ w2.T.astype(jnp.float32))
    return z.astype(x.dtype)[:, :, None, None]


if __name__ == "__main__":
    key = jax.random.PRNGKey(0)

    b, c = 2, 32
    reduction = 16
    c_red = c // reduction  # = 2
    kx, k1, k2 = jax.random.split(key, 3)
    w1 = jax.random.normal(k1, (c_red, c), dtype=jnp.float32) * 0.1
    w2 = jax.random.normal(k2, (c, c_red), dtype=jnp.float32) * 0.1

    # Case 1: canonical small shape -> full-extent spatial block, mask-free path.
    x = jax.random.normal(kx, (b, c, 16, 16), dtype=jnp.float32)
    out = jax.block_until_ready(se_layer(x, w1, w2))
    assert out.shape == (b, c, 1, 1), out.shape
    assert jnp.allclose(out, _reference(x, w1, w2), atol=1e-5, rtol=1e-5), "case 1"

    # Case 2: odd spatial extent (37x37 -> hw=1369) still fits as one full-extent
    # block: single clean step, no ragged masking at all.
    x2 = jax.random.normal(jax.random.PRNGKey(1), (b, c, 37, 37), dtype=jnp.float32)
    out2 = jax.block_until_ready(se_layer(x2, w1, w2))
    assert out2.shape == (b, c, 1, 1), out2.shape
    assert jnp.allclose(out2, _reference(x2, w1, w2), atol=1e-5, rtol=1e-5), "case 2"

    # Case 3: force the tiled + ragged path (lane accumulator, masked tail tile)
    # with a tiny per-buffer budget override.
    out3 = jax.block_until_ready(se_layer(x2, w1, w2, _per_buffer_budget=64 << 10))
    assert jnp.allclose(out3, _reference(x2, w1, w2), atol=1e-5, rtol=1e-5), "case 3"

    # Case 4: force the tiled, non-ragged path (hw = 1024, thw = 512, two steps).
    x4 = jax.random.normal(jax.random.PRNGKey(2), (b, c, 32, 32), dtype=jnp.float32)
    out4 = jax.block_until_ready(se_layer(x4, w1, w2, _per_buffer_budget=64 << 10))
    assert jnp.allclose(out4, _reference(x4, w1, w2), atol=1e-5, rtol=1e-5), "case 4"

    print("KERNEL_OK")
</pallas_src>

<mosaic_0001>
module attributes {stable_mosaic.version = 11 : i64} {
  func.func @_se_kernel_single(%arg0: i32, %arg1: memref<2x32x256xf32, #tpu.memory_space<vmem>>, %arg2: memref<32x2xf32, #tpu.memory_space<vmem>>, %arg3: memref<2x32xf32, #tpu.memory_space<vmem>>, %arg4: memref<2x32xf32, #tpu.memory_space<vmem>>) attributes {dimension_semantics = [#tpu.dimension_semantics<parallel>], iteration_bounds = array<i64: 1>, scalar_prefetch = 0 : i64, scratch_operands = 0 : i64, tpu.core_type = #tpu.core_type<tc>, window_params = [{transform_indices = @transform_0, window_bounds = array<i64: 2, 32, 256>}, {pipeline_mode = #tpu.pipeline_mode<synchronous>, transform_indices = @transform_1, window_bounds = array<i64: 32, 2>}, {pipeline_mode = #tpu.pipeline_mode<synchronous>, transform_indices = @transform_2, window_bounds = array<i64: 2, 32>}, {transform_indices = @transform_3, window_bounds = array<i64: 2, 32>}]} {
    %c0 = arith.constant 0 : index
    %c0_0 = arith.constant 0 : index
    %c0_1 = arith.constant 0 : index
    %0 = vector.load %arg1[%c0, %c0_0, %c0_1] : memref<2x32x256xf32, #tpu.memory_space<vmem>>, vector<2x32x256xf32>
    %1 = vector.extract_strided_slice %0 {offsets = [0, 0, 0], sizes = [2, 32, 128], strides = [1, 1, 1]} : vector<2x32x256xf32> to vector<2x32x128xf32>
    %2 = vector.extract_strided_slice %0 {offsets = [0, 0, 128], sizes = [2, 32, 128], strides = [1, 1, 1]} : vector<2x32x256xf32> to vector<2x32x128xf32>
    %3 = arith.addf %1, %2 : vector<2x32x128xf32>
    %cst = arith.constant dense<0.000000e+00> : vector<2x32xf32>
    %4 = vector.multi_reduction <add>, %3, %cst [2] : vector<2x32x128xf32> to vector<2x32xf32>
    %cst_2 = arith.constant 3.906250e-03 : f32
    %5 = vector.broadcast %cst_2 : f32 to vector<2x32xf32>
    %6 = arith.mulf %4, %5 : vector<2x32xf32>
    %c0_3 = arith.constant 0 : index
    %c0_4 = arith.constant 0 : index
    %7 = vector.load %arg2[%c0_3, %c0_4] : memref<32x2xf32, #tpu.memory_space<vmem>>, vector<32x2xf32>
    %cst_5 = arith.constant dense<0.000000e+00> : vector<2x2xf32>
    %8 = tpu.matmul %6, %7, %cst_5 {dimension_numbers = #tpu.dot_dimension_numbers<[1], [0], [0], [1], [0, 0, 1, 1], [], []>} : vector<2x32xf32>, vector<32x2xf32>, vector<2x2xf32> -> vector<2x2xf32>
    %cst_6 = arith.constant 0.000000e+00 : f32
    %9 = vector.broadcast %cst_6 : f32 to vector<2x2xf32>
    %10 = arith.maximumf %8, %9 : vector<2x2xf32>
    %c0_7 = arith.constant 0 : index
    %c0_8 = arith.constant 0 : index
    %11 = vector.load %arg3[%c0_7, %c0_8] : memref<2x32xf32, #tpu.memory_space<vmem>>, vector<2x32xf32>
    %cst_9 = arith.constant dense<0.000000e+00> : vector<2x32xf32>
    %12 = tpu.matmul %10, %11, %cst_9 {dimension_numbers = #tpu.dot_dimension_numbers<[1], [0], [0], [1], [0, 0, 1, 1], [], []>} : vector<2x2xf32>, vector<2x32xf32>, vector<2x32xf32> -> vector<2x32xf32>
    %13 = arith.negf %12 : vector<2x32xf32>
    %14 = math.exp %13 : vector<2x32xf32>
    %cst_10 = arith.constant 1.000000e+00 : f32
    %15 = vector.broadcast %cst_10 : f32 to vector<2x32xf32>
    %16 = arith.addf %15, %14 : vector<2x32xf32>
    %17 = arith.divf %15, %16 : vector<2x32xf32>
    %c0_11 = arith.constant 0 : index
    %c0_12 = arith.constant 0 : index
    %18 = vector.load %arg4[%c0_11, %c0_12] : memref<2x32xf32, #tpu.memory_space<vmem>>, vector<2x32xf32>
    tpu.vector_store %arg4[%c0_11, %c0_12], %17 {strides = array<i32>} : memref<2x32xf32, #tpu.memory_space<vmem>>, vector<2x32xf32>,
    return
  }
  func.func @transform_0(%arg0: i32) -> (i32, i32, i32) {
    %c0_i32 = arith.constant 0 : i32
    %c0_i32_0 = arith.constant 0 : i32
    %c0_i32_1 = arith.constant 0 : i32
    return %arg0, %c0_i32, %c0_i32_0 : i32, i32, i32
  }
  func.func @transform_1(%arg0: i32) -> (i32, i32) {
    %c0_i32 = arith.constant 0 : i32
    %c0_i32_0 = arith.constant 0 : i32
    %c0_i32_1 = arith.constant 0 : i32
    return %c0_i32, %c0_i32_0 : i32, i32
  }
  func.func @transform_2(%arg0: i32) -> (i32, i32) {
    %c0_i32 = arith.constant 0 : i32
    %c0_i32_0 = arith.constant 0 : i32
    %c0_i32_1 = arith.constant 0 : i32
    return %c0_i32, %c0_i32_0 : i32, i32
  }
  func.func @transform_3(%arg0: i32) -> (i32, i32) {
    %c0_i32 = arith.constant 0 : i32
    %c0_i32_0 = arith.constant 0 : i32
    return %arg0, %c0_i32 : i32, i32
  }
}

</mosaic_0001>

<llo_original>
// kernel: tpu_custom_call.1
$region0: #{tpu_custom_call.1}
  #allocation0 [shape = 'u32[]', space=smem, size = 0x4, offset = 0x4, fixed_abs, tag = 'smem constant byte address 0x4 - core index']
  #allocation1 [shape = 'u32[72,128]{1,0:T(1,128)}', space=vmem, size = 0x9000, scoped, tag = 'internal scratch']
  %s0 = inlined_call_operand.hbm [shape: f32[2,32,256], index: 0, kind: input, shape index: {}]
  %s1 = inlined_call_operand.vmem [shape: f32[32,2], index: 1, kind: input, shape index: {}]
  %s2 = inlined_call_operand.vmem [shape: f32[2,32], index: 2, kind: input, shape index: {}]
  %s3 = inlined_call_operand.hbm [shape: f32[2,32], index: 3, kind: output, shape index: {}]
  %s4 = sld [smem:[#allocation0]]
  $region26: #{tpu_custom_call.1} parent=0
    _
  %s6 = ssub.s32 1, %s4
  %s7 = scalar_select 0, %s6, %s4
  $region1: #{tpu_custom_call.1} parent=0
    #allocation2 [shape = 'u8[65536]{0}', space=vmem, size = 0x10000, scoped, tag = 'input window, operand 0, single buffered']
    #allocation3 [shape = 's32[1]{0}', space=sflag, size = 0x4, scoped, tag = 'scoped memory for tpu_custom_call.1']
    #allocation4 [shape = 's32[1]{0}', space=sflag, size = 0x4, scoped, tag = 'scoped memory for tpu_custom_call.1']
    #allocation5 [shape = 'u8[1024]{0}', space=vmem, size = 0x400, scoped, tag = 'output window, operand 0, single buffered']
    %8 = vsyncpa [#allocation3], 0
    %9 = vsyncpa [#allocation4], 0
    // Predicated region
    $region2: #{tpu_custom_call.1} parent=1 // pred_check
      _
    $region3: #{tpu_custom_call.1} parent=1 // pred_check_branch
      %11 = sbr.rel (0) target = $region5
    $region4: #{tpu_custom_call.1} parent=1 // pred_region
      %13 = vsyncadd [#allocation3], 0
      %s14 = sshll.u32 %s0, 4
      %s15 = int_to_ptr.hbm [resolvable:$true] %s14
      %s16 = sshll.u32 [#allocation2], 4
      %s17 = int_to_ptr.vmem [resolvable:$true] %s16
      %22 = dma.hbm_to_vmem [thread:$0]  %s15, 2048, %s17, [#allocation3], 256, 256, 16
    $region5: #{tpu_custom_call.1} parent=1 // pred_fallthru
      _
    // Predicated region
    $region6: #{tpu_custom_call.1} parent=1 // pred_check
      _
    $region7: #{tpu_custom_call.1} parent=1 // pred_check_branch
      %24 = sbr.rel (0) target = $region9
    $region8: #{tpu_custom_call.1} parent=1 // pred_region
      _
    $region9: #{tpu_custom_call.1} parent=1 // pred_fallthru
      _
    // Predicated region
    $region10: #{tpu_custom_call.1} parent=1 // pred_check
      _
    $region11: #{tpu_custom_call.1} parent=1 // pred_check_branch
      %26 = sbr.rel (0) target = $region13
    $region12: #{tpu_custom_call.1} parent=1 // pred_region
      _
    $region13: #{tpu_custom_call.1} parent=1 // pred_fallthru
      _
    // Predicated region
    $region14: #{tpu_custom_call.1} parent=1 // pred_check
      _
    $region15: #{tpu_custom_call.1} parent=1 // pred_check_branch
      %28 = sbr.rel (0) target = $region17
    $region16: #{tpu_custom_call.1} parent=1 // pred_region
      %30 = dma.done [#allocation3], 2048
    $region17: #{tpu_custom_call.1} parent=1 // pred_fallthru
      _
    %v31 = vld [vmem:[#allocation2] sm:$0xff]
    %v32 = vld [vmem:[#allocation2 + $0x8] sm:$0xff]
    %v33 = vld [vmem:[#allocation2 + $0x10] sm:$0xff]
    %v34 = vld [vmem:[#allocation2 + $0x18] sm:$0xff]
    %v35 = vld [vmem:[#allocation2 + $0x20] sm:$0xff]
    %v36 = vld [vmem:[#allocation2 + $0x28] sm:$0xff]
    %v37 = vld [vmem:[#allocation2 + $0x30] sm:$0xff]
    %v38 = vld [vmem:[#allocation2 + $0x38] sm:$0xff]
    %v39 = vld [vmem:[#allocation2 + $0x40] sm:$0xff]
    %v40 = vld [vmem:[#allocation2 + $0x48] sm:$0xff]
    %v41 = vld [vmem:[#allocation2 + $0x50] sm:$0xff]
    %v42 = vld [vmem:[#allocation2 + $0x58] sm:$0xff]
    %v43 = vld [vmem:[#allocation2 + $0x60] sm:$0xff]
    %v44 = vld [vmem:[#allocation2 + $0x68] sm:$0xff]
    %v45 = vld [vmem:[#allocation2 + $0x70] sm:$0xff]
    %v46 = vld [vmem:[#allocation2 + $0x78] sm:$0xff]
    %v47 = vadd.f32 %v31, %v32
    %v48 = vadd.f32 %v33, %v34
    %v49 = vadd.f32 %v35, %v36
    %v50 = vadd.f32 %v37, %v38
    %v51 = vadd.f32 %v39, %v40
    %v52 = vadd.f32 %v41, %v42
    %v53 = vadd.f32 %v43, %v44
    %v54 = vadd.f32 %v45, %v46
    %55 = vadd.xlane.f32.xlu0 %v47
    %v56 = vpop.xlane.xlu0 %55
    %57 = vadd.xlane.f32.xlu0 %v48
    %v58 = vpop.xlane.xlu0 %57
    %59 = vadd.xlane.f32.xlu0 %v49
    %v60 = vpop.xlane.xlu0 %59
    %61 = vadd.xlane.f32.xlu0 %v50
    %v62 = vpop.xlane.xlu0 %61
    %63 = vadd.xlane.f32.xlu0 %v51
    %v64 = vpop.xlane.xlu0 %63
    %65 = vadd.xlane.f32.xlu0 %v52
    %v66 = vpop.xlane.xlu0 %65
    %67 = vadd.xlane.f32.xlu0 %v53
    %v68 = vpop.xlane.xlu0 %67
    %69 = vadd.xlane.f32.xlu0 %v54
    %v70 = vpop.xlane.xlu0 %69
    %v71 = vmul.f32 %v56, 0.00390625
    %v72 = vmul.f32 %v58, 0.00390625
    %v73 = vmul.f32 %v60, 0.00390625
    %v74 = vmul.f32 %v62, 0.00390625
    %v75 = vmul.f32 %v64, 0.00390625
    %v76 = vmul.f32 %v66, 0.00390625
    %v77 = vmul.f32 %v68, 0.00390625
    %v78 = vmul.f32 %v70, 0.00390625
    %v79 = vld [vmem:[%s1] sm:$0xff]
    %v80 = vld [vmem:[%s1 + $0x8] sm:$0xff]
    %v81 = vld [vmem:[%s1 + $0x10] sm:$0xff]
    %v82 = vld [vmem:[%s1 + $0x18] sm:$0xff]
    %v91 = vlaneseq
    %v92 = vand.u32 %v91, 127
    %v93 = vperm.slane %v71, %v92
    %v94 = vadd.s32 %v92, 4294967288
    %v95 = vperm.slane %v72, %v94
    %vm96 = vcmask 130112
    %v97 = vsel %vm96, %v95, %v93
    %v98 = vadd.s32 %v92, 4294967280
    %v99 = vperm.slane %v73, %v98
    %vm100 = vcmask 195712
    %v101 = vsel %vm100, %v99, %v97
    %v102 = vadd.s32 %v92, 4294967272
    %v103 = vperm.slane %v74, %v102
    %vm104 = vcmask 261312
    %v105 = vsel %vm104, %v103, %v101
    %v106 = vperm.slane %v75, %v92
    %v107 = vperm.slane %v76, %v94
    %v108 = vsel %vm96, %v107, %v106
    %v109 = vperm.slane %v77, %v98
    %v110 = vsel %vm100, %v109, %v108
    %v111 = vperm.slane %v78, %v102
    %v112 = vsel %vm104, %v111, %v110
    %vm113 = vcmask 1041409
    %v114 = vsel %vm113, %v112, %v105
    %vm115 = vcmask 261120
    %v116 = vsel %vm115, %v114, 0
    %118 = vmatpush.msra.mxu0 0.0
    %119 = vmatpush.msra.mxu0 0.0
    %120 = vmatpush.msra.mxu0 0.0
    %121 = vmatpush.msra.mxu0 0.0
    %122 = vmatpush.msra.mxu0 0.0
    %123 = vmatpush.msra.mxu0 0.0
    %124 = vmatpush.msra.mxu0 0.0
    %125 = vmatpush.msra.mxu0 0.0
    %126 = vmatpush.msra.mxu0 0.0
    %127 = vmatpush.msra.mxu0 0.0
    %128 = vmatpush.msra.mxu0 0.0
    %129 = vmatpush.msra.mxu0 0.0
    %130 = vmatpush.msra.mxu0 %v82
    %131 = vmatpush.msra.mxu0 %v81
    %132 = vmatpush.msra.mxu0 %v80
    %133 = vmatpush.msra.mxu0 %v79
    %134 = vmatmul.f32.gmra.mxu0 %v116
    %v135 = vpop.f32.mrf.mxu0
    %v136 = vadd.f32 0.0, %v135
    %137 = vdwg.mxu0
    %v138 = vmax.f32 %v136, 0.0
    %v139 = vld [vmem:[%s2] sm:$0x3]
    %vm140 = vcmask 15360
    %v142 = vsel %vm140, %v138, 0
    %vm144 = vcmask 1041408
    %v146 = vsel %vm144, %v139, 0
    %148 = vmatpush.msra.mxu0 0.0
    %149 = vmatpush.msra.mxu0 0.0
    %150 = vmatpush.msra.mxu0 0.0
    %151 = vmatpush.msra.mxu0 0.0
    %152 = vmatpush.msra.mxu0 0.0
    %153 = vmatpush.msra.mxu0 0.0
    %154 = vmatpush.msra.mxu0 0.0
    %155 = vmatpush.msra.mxu0 0.0
    %156 = vmatpush.msra.mxu0 0.0
    %157 = vmatpush.msra.mxu0 0.0
    %158 = vmatpush.msra.mxu0 0.0
    %159 = vmatpush.msra.mxu0 0.0
    %160 = vmatpush.msra.mxu0 0.0
    %161 = vmatpush.msra.mxu0 0.0
    %162 = vmatpush.msra.mxu0 0.0
    %163 = vmatpush.msra.mxu0 %v146
    %164 = vmatmul.f32.gmra.mxu0 %v142
    %v165 = vpop.f32.mrf.mxu0
    %v166 = vadd.f32 0.0, %v165
    %167 = vdwg.mxu0
    %v168 = vxor.u32 %v166, 2147483648
    %v169 = vmul.f32 %v168, 1.442695
    %v170 = vpow.pop %v169
    %v171 = vadd.f32 %v170, 1.0
    %v172 = vrcp.pop %v171
    %v173 = vmul.f32 %v171, %v172
    %v174 = vsub.f32 1.0, %v173
    %v175 = vmul.f32 %v172, %v174
    %v176 = vadd.f32 %v172, %v175
    %vm177 = vweird.f32 %v171
    %vm178 = vweird.f32 %v172
    %vm179 = vmor %vm177, %vm178
    %v180 = vsel %vm179, %v172, %v176
    %v181 = vand.u32 2147483647, %v171
    %vm182 = vcmp.eq.f32.partialorder %v181, 8.507059e+37
    %v183 = vand.u32 %v171, 2147483648
    %v184 = vor.u32 1.1754944e-38, %v183
    %v185 = vsel %vm182, %v184, %v180
    %v186 = vmul.f32 1.0, %v185
    %vm187 = vcmask 254976
    %188 = vst.msk [vmem:[#allocation5] sm:$0x3] %vm187, %v186
    // Predicated region
    $region18: #{tpu_custom_call.1} parent=1 // pred_check
      _
    $region19: #{tpu_custom_call.1} parent=1 // pred_check_branch
      %190 = sbr.rel (0) target = $region21
    $region20: #{tpu_custom_call.1} parent=1 // pred_region
      %192 = vsyncadd [#allocation4], 0
      %s194 = sshll.u32 [#allocation5], 4
      %s195 = int_to_ptr.vmem [resolvable:$true] %s194
      %s196 = sshll.u32 %s3, 4
      %s197 = int_to_ptr.hbm [resolvable:$true] %s196
      %199 = dma.vmem_to_hbm [thread:$0]  %s195, 32, %s197, [#allocation4]
    $region21: #{tpu_custom_call.1} parent=1 // pred_fallthru
      _
    // Predicated region
    $region22: #{tpu_custom_call.1} parent=1 // pred_check
      _
    $region23: #{tpu_custom_call.1} parent=1 // pred_check_branch
      %201 = sbr.rel (0) target = $region25
    $region24: #{tpu_custom_call.1} parent=1 // pred_region
      %203 = dma.done [#allocation4], 32
    $region25: #{tpu_custom_call.1} parent=1 // pred_fallthru
      _
    %204 = vsyncpa [#allocation3], 1
    %205 = vsyncpa [#allocation4], 1

</llo_original>
